<compile_context>
chip_gen: v7x
topology: tpu7x:2x2x1
jax: 0.10.0
libtpu: 0.0.40
codegen_flags: <defaults>
</compile_context>

<pallas_src>
import functools
import math

import jax
import jax.numpy as jnp
from jax.experimental import pallas as pl
from jax.experimental.pallas import tpu as pltpu

EMBED_DIM = 64
NUM_ITEMS = 239
SENTINEL = -1e38        # "no edge" marker packed into the edge-attribute matrix
MASK_THRESH = -1e30     # eattr > MASK_THRESH  <=>  edge present
ROW_ALIGN = 16          # node-row padding (bf16 sublane tile)
ROW_TILE = 256          # target-row tile for the attention kernel

VMEM = pltpu.MemorySpace.VMEM
SMEM = pltpu.MemorySpace.SMEM


def _vspec():
    return pl.BlockSpec(memory_space=VMEM)


def _sspec():
    return pl.BlockSpec(memory_space=SMEM)


def _round_up(v, m):
    return ((v + m - 1) // m) * m


# ---------------------------------------------------------------------------
# Pallas kernels
# ---------------------------------------------------------------------------
def _feat_kernel(x_ref, w_ref, h_ref, sdst_ref, ssrc_ref, *, fo):
    """One bf16 MXU pass with the 128-lane augmented weight [w | w@a_dst | w@a_src | 0].

    x:[Np,Fin] f32, w:[Fin,128] f32 -> h:[Np,Fo] bf16, s_dst:[Np,1] f32, s_src:[1,Np] f32.
    """
    y = jnp.dot(x_ref[...].astype(jnp.bfloat16), w_ref[...].astype(jnp.bfloat16),
                preferred_element_type=jnp.float32)                  # [Np, 128]
    h_ref[...] = y[:, :fo].astype(jnp.bfloat16)
    sdst_ref[...] = y[:, fo:fo + 1]
    ssrc_ref[...] = jnp.transpose(y[:, fo + 1:fo + 2], (1, 0))       # XLU transpose


def _gat_attn_kernel(aedge_ref, sdst_ref, ssrc_ref, h_ref, eattr_ref,
                     out_ref, alpha_ref, *, att_slope, out_slope):
    """Row-tiled masked GAT softmax + aggregation.

    Per grid step: eattr / s_dst / alpha / out hold one (tm, *) target-row tile,
    s_src and h are resident.  eattr packs the mask (non-edge == SENTINEL).
    Row softmax is exact under row tiling (no online softmax needed).
    """
    ea = eattr_ref[...]                                              # [tm, Np]
    mask = ea > MASK_THRESH
    logits = (sdst_ref[...] + ssrc_ref[...]
              + aedge_ref[0] * jnp.where(mask, ea, 0.0))
    logits = jnp.where(logits >= 0, logits, att_slope * logits)      # GAT leaky (0.2)
    logits = jnp.where(mask, logits, MASK_THRESH)                    # mask after leaky
    m = jnp.max(logits, axis=-1, keepdims=True)
    p = jnp.where(mask, jnp.exp(logits - m), 0.0)                    # f32 softmax path
    denom = jnp.maximum(jnp.sum(p, axis=-1, keepdims=True), 1e-16)
    alpha = p / denom
    alpha_ref[...] = alpha
    out = jnp.dot(alpha.astype(jnp.bfloat16), h_ref[...],            # bf16 MXU, f32 acc
                  preferred_element_type=jnp.float32)
    out_ref[...] = jnp.where(out >= 0, out, out_slope * out)         # F.leaky_relu


def gat_conv_dense(x, w, a_src, a_dst, a_edge, eattr_packed,
                   att_slope=0.2, out_slope=0.01, row_tile=ROW_TILE):
    # TODO(synk): ConditionalGATConv source unavailable; standard GATConv with the
    # scalar edge attribute added (scaled by a learned scalar) to the attention logits.
    n, fin = x.shape
    fo = w.shape[1]
    n_pad = _round_up(max(n, ROW_ALIGN), ROW_ALIGN)
    tm = min(row_tile, n_pad)
    n_pad = _round_up(n_pad, tm)
    grid_rows = n_pad // tm

    # augmented, 128-lane-padded weight -> single MXU pass in the feature kernel
    w_aug = jnp.concatenate(
        [w, (w @ a_dst)[:, None], (w @ a_src)[:, None],
         jnp.zeros((fin, 128 - fo - 2), jnp.float32)], axis=1)        # [Fin, 128]
    x_pad = jnp.pad(x.astype(jnp.float32), ((0, n_pad - n), (0, 0)))
    eattr_pad = jnp.pad(eattr_packed, ((0, n_pad - n), (0, n_pad - n)),
                        constant_values=SENTINEL)

    h, s_dst, s_src = pl.pallas_call(
        functools.partial(_feat_kernel, fo=fo),
        out_shape=(jax.ShapeDtypeStruct((n_pad, fo), jnp.bfloat16),
                   jax.ShapeDtypeStruct((n_pad, 1), jnp.float32),
                   jax.ShapeDtypeStruct((1, n_pad), jnp.float32)),
        in_specs=[_vspec(), _vspec()],
        out_specs=(_vspec(), _vspec(), _vspec()),
    )(x_pad, w_aug)

    out, alpha = pl.pallas_call(
        functools.partial(_gat_attn_kernel, att_slope=att_slope, out_slope=out_slope),
        grid=(grid_rows,),
        out_shape=(jax.ShapeDtypeStruct((n_pad, fo), jnp.float32),
                   jax.ShapeDtypeStruct((n_pad, n_pad), jnp.float32)),
        in_specs=[_sspec(),                                           # a_edge scalar (SMEM)
                  pl.BlockSpec((tm, 1), lambda i: (i, 0)),            # s_dst (row tile)
                  pl.BlockSpec((1, n_pad), lambda i: (0, 0)),         # s_src (resident)
                  pl.BlockSpec((n_pad, fo), lambda i: (0, 0)),        # h     (resident)
                  pl.BlockSpec((tm, n_pad), lambda i: (i, 0))],       # eattr (row tile)
        out_specs=(pl.BlockSpec((tm, fo), lambda i: (i, 0)),
                   pl.BlockSpec((tm, n_pad), lambda i: (i, 0))),
        compiler_params=pltpu.CompilerParams(
            dimension_semantics=("parallel",),                        # v7x megacore
            vmem_limit_bytes=48 * 1024 * 1024),
    )(a_edge.reshape(1), s_dst, s_src, h, eattr_pad)
    # TODO(synk): alpha still round-trips HBM to be permuted into conv2's eattr;
    # avoiding it needs an in-kernel 2D gather by the TopK permutation.
    return out[:n], alpha[:n, :n]


def _tail_kernel(x_ref, w1_ref, b1_ref, w2_ref, b2_ref,
                 wihq_ref, wihr_ref, bih_ref, whh_ref, bhh_ref,
                 w3q_ref, w3r_ref, w3l_ref, b3_ref,
                 last2_ref, embt_ref, scr_ref, staw_ref, sta_ref,
                 o_ref, r_sc, *, nb, npg, steps, slope):
    """Fused tail: lin1+LeakyReLU+lin2(+eval dropout id)+LeakyReLU, 5-step
    Set2Set GRU readout, lin3, item scoring and multi-sta preference fusion."""
    d = 64
    f32 = jnp.float32
    # --- MLP ---
    y = jnp.dot(x_ref[...], w1_ref[...], preferred_element_type=f32) + b1_ref[...]
    y = jnp.where(y >= 0, y, slope * y)
    y = jnp.dot(y, w2_ref[...], preferred_element_type=f32) + b2_ref[...]
    y = jnp.where(y >= 0, y, slope * y)                               # [nb*npg, 64]

    # --- Set2Set GRU readout (q_star = [q | r], formed via split weights) ---
    # TODO(synk): Set2Set_GRU source unavailable; standard Set2Set readout with a GRUCell.
    h = jnp.zeros((nb, d), f32)
    q = jnp.zeros((nb, d), f32)
    r = jnp.zeros((nb, d), f32)
    for _ in range(steps):                                            # static unroll
        gi = (jnp.dot(q, wihq_ref[...], preferred_element_type=f32)
              + jnp.dot(r, wihr_ref[...], preferred_element_type=f32)
              + bih_ref[...])                                         # [nb, 192]
        gh = jnp.dot(h, whh_ref[...], preferred_element_type=f32) + bhh_ref[...]
        rg = jax.nn.sigmoid(gi[:, 0:d] + gh[:, 0:d])
        zg = jax.nn.sigmoid(gi[:, d:2 * d] + gh[:, d:2 * d])
        ng = jnp.tanh(gi[:, 2 * d:3 * d] + rg * gh[:, 2 * d:3 * d])
        h = (1.0 - zg) * ng + zg * h
        q = h
        for b in range(nb):                                           # per-graph attention
            xb = y[b * npg:(b + 1) * npg, :]                          # [npg, 64]
            e = jnp.sum(xb * q[b:b + 1, :], axis=-1, keepdims=True)   # [npg, 1]
            m = jnp.max(e, axis=0, keepdims=True)
            p = jnp.exp(e - m)
            a = p / jnp.sum(p, axis=0, keepdims=True)
            r_sc[pl.ds(b, 1), :] = jnp.sum(a * xb, axis=0, keepdims=True)
        r = r_sc[...]

    # --- lin3 on [q | r | last2] (concat folded into split weights) ---
    x3 = (jnp.dot(q, w3q_ref[...], preferred_element_type=f32)
          + jnp.dot(r, w3r_ref[...], preferred_element_type=f32)
          + last2_ref[...] * w3l_ref[...]
          + b3_ref[...])                                              # [nb, 64]

    # --- item scoring * pref_fuse * sta (lane-dense 256-wide output) ---
    logits = jnp.dot(x3, embt_ref[...], preferred_element_type=f32)   # [nb, NIp]
    e_all = jnp.exp(scr_ref[...])                                     # one EUP pass [6*nb, NIp]
    pref = staw_ref[0] * e_all[0:nb]
    for k in range(1, 6):
        pref = pref + staw_ref[k] * e_all[k * nb:(k + 1) * nb]
    o_ref[...] = logits * pref * sta_ref[...]


def tail_fused(x_nodes, last2_col, scr_list, sta, params,
               num_graphs, n_per_graph, steps=5, slope=0.01):
    b = num_graphs
    d = 64
    ni = params["item_emb"].shape[0]
    ni_pad = _round_up(ni, 128)                                       # 239 -> 256 lanes

    # operand prep (params-only; hoisted / constant-folded under jit)
    w_ih_t = params["gru"]["w_ih"].T                                  # [128, 192]
    wihq, wihr = w_ih_t[:d], w_ih_t[d:]
    whh_t = params["gru"]["w_hh"].T                                   # [64, 192]
    w3 = params["lin3_w"]                                             # [129, 64]
    w3q, w3r, w3l = w3[:d], w3[d:2 * d], w3[2 * d:2 * d + 1]
    emb_t = jnp.pad(params["item_emb"], ((0, ni_pad - ni), (0, 0))).T  # [64, NIp]
    sta_pad = jnp.pad(sta, (0, ni_pad - ni)).reshape(1, ni_pad)
    scr_pad = jnp.pad(jnp.stack(scr_list, axis=0),
                      ((0, 0), (0, 0), (0, ni_pad - ni))).reshape(6 * b, ni_pad)

    out = pl.pallas_call(
        functools.partial(_tail_kernel, nb=b, npg=n_per_graph, steps=steps, slope=slope),
        out_shape=jax.ShapeDtypeStruct((b, ni_pad), jnp.float32),
        in_specs=[_vspec()] * 17 + [_sspec(), _vspec()],
        out_specs=_vspec(),
        scratch_shapes=[pltpu.VMEM((b, d), jnp.float32)],
    )(x_nodes.astype(jnp.float32),
      params["lin1_w"], params["lin1_b"].reshape(1, -1),
      params["lin2_w"], params["lin2_b"].reshape(1, -1),
      wihq, wihr, params["gru"]["b_ih"].reshape(1, -1),
      whh_t, params["gru"]["b_hh"].reshape(1, -1),
      w3q, w3r, w3l, params["lin3_b"].reshape(1, -1),
      last2_col, emb_t, scr_pad, params["sta_weight"], sta_pad)
    return out[:, :ni]


# ---------------------------------------------------------------------------
# Plain-JAX glue (data-dependent graph ops)
# ---------------------------------------------------------------------------
def duration2weight(d):
    # TODO(synk): duration2weight source unavailable; use 1/(1+log1p(d)).
    return 1.0 / (1.0 + jnp.log1p(d))


def norm_torchtensor(t):
    # TODO(synk): norm_torchtensor source unavailable; min-max normalize to [0, 1].
    return (t - t.min()) / (t.max() - t.min() + 1e-12)


def to_dense_packed(edge_index, edge_w, n):
    """Dense [target, source] edge-attribute matrix with non-edges = SENTINEL
    (mask packed into the same matrix -> one fewer [N, N] input per conv)."""
    src, dst = edge_index[0], edge_index[1]
    adj = jnp.zeros((n, n), jnp.float32).at[dst, src].set(1.0)
    eattr = jnp.full((n, n), SENTINEL, jnp.float32).at[dst, src].set(edge_w)
    return adj, eattr


def topk_pool(x, adj, alpha_dense, batch, num_graphs, n_per_graph, k, p_weight):
    """TopKPooling (ratio applied per graph, equal-size contiguous graphs)."""
    score_ = x @ p_weight / (jnp.linalg.norm(p_weight) + 1e-16)       # [N]
    score_g = score_.reshape(num_graphs, n_per_graph)
    _, idx = jax.lax.top_k(score_g, k)                                # [B, k]
    perm = (idx + (jnp.arange(num_graphs) * n_per_graph)[:, None]).reshape(-1)
    gate = jnp.tanh(score_[perm])
    x_new = x[perm] * gate[:, None]
    adj_new = adj[perm][:, perm]
    alpha_new = alpha_dense[perm][:, perm]
    eattr_new = jnp.where(adj_new > 0.0, alpha_new, SENTINEL)         # packed for next conv
    batch_new = batch[perm]
    return x_new, adj_new, eattr_new, batch_new, k


# ---------------------------------------------------------------------------
# Full forward
# ---------------------------------------------------------------------------
def psr_gat_forward(params, data, sta):
    x_ids = data["x"]                       # [N, 1] int32 item ids
    edge_index = data["edge_index"]         # [2, E]
    batch = data["batch"]                   # [N]
    num_graphs = int(data["num_graphs"])
    n_total = x_ids.shape[0]
    n_per_graph = n_total // num_graphs

    edge_w = duration2weight(data["edge_attr"].astype(jnp.float32))
    last2 = duration2weight(data["last2_edge_attr"].astype(jnp.float32))   # [B, L]
    scr = [norm_torchtensor(data[k].astype(jnp.float32))
           for k in ("scr_freq_m", "scr_dur_m", "scr_freq_w",
                     "scr_dur_w", "scr_freq_d", "scr_dur_d")]

    emb_item = params["item_emb"][x_ids[:, 0]]                        # gather -> glue

    adj, eattr = to_dense_packed(edge_index, edge_w, n_total)

    # conv1 + leaky_relu (fused into kernels)
    x, alpha1 = gat_conv_dense(emb_item, params["w1"], params["asrc1"],
                               params["adst1"], params["aedge1"], eattr)
    k1 = math.ceil(0.9 * n_per_graph)
    x, adj, eattr, batch, n_per_graph = topk_pool(
        x, adj, alpha1, batch, num_graphs, n_per_graph, k1, params["p1"])

    # conv2 + leaky_relu
    x, alpha2 = gat_conv_dense(x, params["w2"], params["asrc2"],
                               params["adst2"], params["aedge2"], eattr)
    k2 = math.ceil(0.9 * n_per_graph)
    x, adj, eattr, batch, n_per_graph = topk_pool(
        x, adj, alpha2, batch, num_graphs, n_per_graph, k2, params["p2"])

    # fused tail: MLP + Set2Set GRU readout + lin3 + item scoring (single kernel)
    out = tail_fused(x, last2[:, 0:1], scr, sta, params, num_graphs, n_per_graph)
    return out                                                         # [B, NI]


# ---------------------------------------------------------------------------
# Deterministic parameter / data construction
# ---------------------------------------------------------------------------
def make_params(key):
    ks = jax.random.split(key, 24)

    def nrm(k, shape, scale=0.1):
        return (scale * jax.random.normal(k, shape)).astype(jnp.float32)

    return {
        "item_emb": nrm(ks[0], (NUM_ITEMS, EMBED_DIM)),
        "w1": nrm(ks[1], (EMBED_DIM, 64)),
        "asrc1": nrm(ks[2], (64,)),
        "adst1": nrm(ks[3], (64,)),
        "aedge1": jnp.full((1,), 0.5, jnp.float32),
        "p1": nrm(ks[4], (64,)),
        "w2": nrm(ks[5], (64, 64)),
        "asrc2": nrm(ks[6], (64,)),
        "adst2": nrm(ks[7], (64,)),
        "aedge2": jnp.full((1,), 0.5, jnp.float32),
        "p2": nrm(ks[8], (64,)),
        "lin1_w": nrm(ks[9], (64, 64)),
        "lin1_b": nrm(ks[10], (64,), 0.01),
        "lin2_w": nrm(ks[11], (64, 64)),
        "lin2_b": nrm(ks[12], (64,), 0.01),
        "lin3_w": nrm(ks[13], (64 * 2 + 1, 64)),
        "lin3_b": nrm(ks[14], (64,), 0.01),
        "gru": {
            "w_ih": nrm(ks[15], (3 * 64, 2 * 64)),
            "w_hh": nrm(ks[16], (3 * 64, 64)),
            "b_ih": jnp.zeros((3 * 64,), jnp.float32),
            "b_hh": jnp.zeros((3 * 64,), jnp.float32),
        },
        "sta_weight": jax.random.uniform(ks[17], (6,), jnp.float32, 0.01, 1.0),
    }


def make_data(key, num_graphs=2, n_per_graph=10):
    kd = jax.random.split(key, 10)
    n_total = num_graphs * n_per_graph

    src, dst = [], []
    for g in range(num_graphs):
        off = g * n_per_graph
        for i in range(n_per_graph):
            src.append(off + i); dst.append(off + i)           # self loop
            if i + 1 < n_per_graph:
                src.append(off + i); dst.append(off + i + 1)   # chain edges
                src.append(off + i + 1); dst.append(off + i)
    edge_index = jnp.array([src, dst], dtype=jnp.int32)
    n_edges = edge_index.shape[1]

    data = {
        "x": jax.random.randint(kd[0], (n_total, 1), 0, NUM_ITEMS, jnp.int32),
        "edge_index": edge_index,
        "batch": jnp.repeat(jnp.arange(num_graphs, dtype=jnp.int32), n_per_graph),
        "num_graphs": num_graphs,
        "edge_attr": jax.random.uniform(kd[1], (n_edges,), jnp.float32, 1.0, 100.0),
        "last2_edge_attr": jax.random.uniform(kd[2], (num_graphs, 2), jnp.float32, 1.0, 100.0),
        "scr_freq_m": jax.random.uniform(kd[3], (num_graphs, NUM_ITEMS), jnp.float32),
        "scr_dur_m": jax.random.uniform(kd[4], (num_graphs, NUM_ITEMS), jnp.float32),
        "scr_freq_w": jax.random.uniform(kd[5], (num_graphs, NUM_ITEMS), jnp.float32),
        "scr_dur_w": jax.random.uniform(kd[6], (num_graphs, NUM_ITEMS), jnp.float32),
        "scr_freq_d": jax.random.uniform(kd[7], (num_graphs, NUM_ITEMS), jnp.float32),
        "scr_dur_d": jax.random.uniform(kd[8], (num_graphs, NUM_ITEMS), jnp.float32),
    }
    sta = jax.random.uniform(kd[9], (NUM_ITEMS,), jnp.float32, 0.5, 1.5)
    return data, sta


if __name__ == "__main__":
    root = jax.random.PRNGKey(0)
    k_params, k_data = jax.random.split(root)
    params = make_params(k_params)
    data, sta = make_data(k_data, num_graphs=2, n_per_graph=10)

    out = psr_gat_forward(params, data, sta)
    out = jax.block_until_ready(out)
    assert out.shape == (2, NUM_ITEMS) and out.dtype == jnp.float32
    assert bool(jnp.all(jnp.isfinite(out)))
    print("KERNEL_OK")
</pallas_src>

<mosaic_0001>
module attributes {stable_mosaic.version = 11 : i64} {
  func.func @_feat_kernel(%arg0: memref<32x64xf32, #tpu.memory_space<vmem>>, %arg1: memref<64x128xf32, #tpu.memory_space<vmem>>, %arg2: memref<32x64xbf16, #tpu.memory_space<vmem>>, %arg3: memref<32x1xf32, #tpu.memory_space<vmem>>, %arg4: memref<1x32xf32, #tpu.memory_space<vmem>>) attributes {dimension_semantics = [], scalar_prefetch = 0 : i64, scratch_operands = 0 : i64, tpu.core_type = #tpu.core_type<tc>} {
    %c0 = arith.constant 0 : index
    %c0_0 = arith.constant 0 : index
    %0 = vector.load %arg0[%c0, %c0_0] : memref<32x64xf32, #tpu.memory_space<vmem>>, vector<32x64xf32>
    %1 = arith.truncf %0 : vector<32x64xf32> to vector<32x64xbf16>
    %c0_1 = arith.constant 0 : index
    %c0_2 = arith.constant 0 : index
    %2 = vector.load %arg1[%c0_1, %c0_2] : memref<64x128xf32, #tpu.memory_space<vmem>>, vector<64x128xf32>
    %3 = arith.truncf %2 : vector<64x128xf32> to vector<64x128xbf16>
    %cst = arith.constant dense<0.000000e+00> : vector<32x128xf32>
    %4 = tpu.matmul %1, %3, %cst {dimension_numbers = #tpu.dot_dimension_numbers<[1], [0], [0], [1], [0, 0, 1, 1], [], []>} : vector<32x64xbf16>, vector<64x128xbf16>, vector<32x128xf32> -> vector<32x128xf32>
    %5 = vector.extract_strided_slice %4 {offsets = [0, 0], sizes = [32, 64], strides = [1, 1]} : vector<32x128xf32> to vector<32x64xf32>
    %6 = arith.truncf %5 : vector<32x64xf32> to vector<32x64xbf16>
    %c0_3 = arith.constant 0 : index
    %c0_4 = arith.constant 0 : index
    %7 = vector.load %arg2[%c0_3, %c0_4] : memref<32x64xbf16, #tpu.memory_space<vmem>>, vector<32x64xbf16>
    tpu.vector_store %arg2[%c0_3, %c0_4], %6 {strides = array<i32>} : memref<32x64xbf16, #tpu.memory_space<vmem>>, vector<32x64xbf16>,
    %8 = vector.extract_strided_slice %4 {offsets = [0, 64], sizes = [32, 1], strides = [1, 1]} : vector<32x128xf32> to vector<32x1xf32>
    %c0_5 = arith.constant 0 : index
    %c0_6 = arith.constant 0 : index
    %9 = vector.load %arg3[%c0_5, %c0_6] : memref<32x1xf32, #tpu.memory_space<vmem>>, vector<32x1xf32>
    tpu.vector_store %arg3[%c0_5, %c0_6], %8 {strides = array<i32>} : memref<32x1xf32, #tpu.memory_space<vmem>>, vector<32x1xf32>,
    %10 = vector.extract_strided_slice %4 {offsets = [0, 65], sizes = [32, 1], strides = [1, 1]} : vector<32x128xf32> to vector<32x1xf32>
    %11 = tpu.transpose %10, [1, 0] : vector<32x1xf32> -> vector<1x32xf32>
    %c0_7 = arith.constant 0 : index
    %c0_8 = arith.constant 0 : index
    %12 = vector.load %arg4[%c0_7, %c0_8] : memref<1x32xf32, #tpu.memory_space<vmem>>, vector<1x32xf32>
    tpu.vector_store %arg4[%c0_7, %c0_8], %11 {strides = array<i32>} : memref<1x32xf32, #tpu.memory_space<vmem>>, vector<1x32xf32>,
    return
  }
}

</mosaic_0001>

<llo_original>
// kernel: tpu_custom_call.1
$region0: #{tpu_custom_call.1}
  #allocation0 [shape = 'u32[]', space=smem, size = 0x4, offset = 0x4, fixed_abs, tag = 'smem constant byte address 0x4 - core index']
  #allocation1 [shape = 'u32[144,128]{1,0:T(1,128)}', space=vmem, size = 0x12000, scoped, tag = 'internal scratch']
  %s0 = inlined_call_operand.hbm [shape: f32[32,64], index: 0, kind: input, shape index: {}]
  %s1 = inlined_call_operand.hbm [shape: f32[64,128], index: 1, kind: input, shape index: {}]
  %s2 = inlined_call_operand.hbm [shape: bf16[32,64], index: 2, kind: output, shape index: {0}]
  %s3 = inlined_call_operand.vmem [shape: f32[32,1], index: 3, kind: output, shape index: {1}]
  %s4 = inlined_call_operand.hbm [shape: f32[1,32], index: 4, kind: output, shape index: {2}]
  %5 = xla_tuple %s2, %s3, %s4
  %s6 = sld [smem:[#allocation0]]
  $region42: #{tpu_custom_call.1} parent=0
    _
  %s8 = ssub.s32 1, %s6
  %s9 = scalar_select 0, %s8, %s6
  $region1: #{tpu_custom_call.1} parent=0
    #allocation2 [shape = 'u8[16384]{0}', space=vmem, size = 0x4000, scoped, tag = 'input window, operand 0, single buffered']
    #allocation3 [shape = 's32[1]{0}', space=sflag, size = 0x4, scoped, tag = 'scoped memory for tpu_custom_call.1']
    #allocation4 [shape = 's32[1]{0}', space=sflag, size = 0x4, scoped, tag = 'scoped memory for tpu_custom_call.1']
    #allocation5 [shape = 'u8[32768]{0}', space=vmem, size = 0x8000, scoped, tag = 'input window, operand 1, single buffered']
    #allocation6 [shape = 's32[1]{0}', space=sflag, size = 0x4, scoped, tag = 'scoped memory for tpu_custom_call.1']
    #allocation7 [shape = 'u8[8192]{0}', space=vmem, size = 0x2000, scoped, tag = 'output window, operand 0, single buffered']
    #allocation8 [shape = 'u8[512]{0}', space=vmem, size = 0x400, scoped, tag = 'output window, operand 2, single buffered']
    #allocation9 [shape = 's32[1]{0}', space=sflag, size = 0x4, scoped, tag = 'scoped memory for tpu_custom_call.1']
    %10 = vsyncpa [#allocation3], 0
    %11 = vsyncpa [#allocation6], 0
    %12 = vsyncpa [#allocation4], 0
    %13 = vsyncpa [#allocation9], 0
    // Predicated region
    $region2: #{tpu_custom_call.1} parent=1 // pred_check
      _
    $region3: #{tpu_custom_call.1} parent=1 // pred_check_branch
      %15 = sbr.rel (0) target = $region5
    $region4: #{tpu_custom_call.1} parent=1 // pred_region
      %s17 = ssub.s32 512, 512
      %18 = vsyncadd [#allocation3], %s17
      %s19 = sshll.u32 [#allocation2], 4
      %s20 = int_to_ptr.vmem [resolvable:$true] %s19
      %25 = dma.hbm_to_vmem [thread:$0]  %s0, 512, %s20, [#allocation3], 128, 128, 8
    $region5: #{tpu_custom_call.1} parent=1 // pred_fallthru
      _
    // Predicated region
    $region6: #{tpu_custom_call.1} parent=1 // pred_check
      _
    $region7: #{tpu_custom_call.1} parent=1 // pred_check_branch
      %27 = sbr.rel (0) target = $region9
    $region8: #{tpu_custom_call.1} parent=1 // pred_region
      %s29 = ssub.s32 1024, 1024
      %30 = vsyncadd [#allocation6], %s29
      %s31 = sshll.u32 [#allocation5], 4
      %s32 = int_to_ptr.vmem [resolvable:$true] %s31
      %37 = dma.hbm_to_vmem [thread:$0]  %s1, 1024, %s32, [#allocation6], 128, 128, 8
    $region9: #{tpu_custom_call.1} parent=1 // pred_fallthru
      _
    // Predicated region
    $region10: #{tpu_custom_call.1} parent=1 // pred_check
      _
    $region11: #{tpu_custom_call.1} parent=1 // pred_check_branch
      %39 = sbr.rel (0) target = $region13
    $region12: #{tpu_custom_call.1} parent=1 // pred_region
      %40 = dma.done [#allocation3], 512
    $region13: #{tpu_custom_call.1} parent=1 // pred_fallthru
      _
    // Predicated region
    $region14: #{tpu_custom_call.1} parent=1 // pred_check
      _
    $region15: #{tpu_custom_call.1} parent=1 // pred_check_branch
      %42 = sbr.rel (0) target = $region17
    $region16: #{tpu_custom_call.1} parent=1 // pred_region
      %43 = dma.done [#allocation6], 1024
    $region17: #{tpu_custom_call.1} parent=1 // pred_fallthru
      _
    %v45 = vld [vmem:[#allocation2] sm:$0xff]
    %v46 = vld [vmem:[#allocation2 + $0x8] sm:$0xff]
    %v47 = vld [vmem:[#allocation2 + $0x10] sm:$0xff]
    %v48 = vld [vmem:[#allocation2 + $0x18] sm:$0xff]
    %v49 = vpack.c.bf16 %v46, %v45
    %v50 = vpack.c.bf16 %v48, %v47
    %v51 = vld [vmem:[#allocation5] sm:$0xff]
    %v52 = vld [vmem:[#allocation5 + $0x8] sm:$0xff]
    %v53 = vld [vmem:[#allocation5 + $0x10] sm:$0xff]
    %v54 = vld [vmem:[#allocation5 + $0x18] sm:$0xff]
    %v55 = vld [vmem:[#allocation5 + $0x20] sm:$0xff]
    %v56 = vld [vmem:[#allocation5 + $0x28] sm:$0xff]
    %v57 = vld [vmem:[#allocation5 + $0x30] sm:$0xff]
    %v58 = vld [vmem:[#allocation5 + $0x38] sm:$0xff]
    %v59 = vpack.c.bf16 %v52, %v51
    %v60 = vpack.c.bf16 %v54, %v53
    %v61 = vpack.c.bf16 %v56, %v55
    %v62 = vpack.c.bf16 %v58, %v57
    %vm63 = vcmask 523264
    %v65 = vsel %vm63, %v49, 0
    %v68 = vsel %vm63, %v50, 0
    %70 = vmatprep.subr.bf16.mxu0 0
    %71 = vmatpush1.bf16.msra.mxu0 %v59
    %72 = vmatprep.subr.bf16.mxu0 0
    %73 = vmatpush1.bf16.msra.mxu0 %v60
    %74 = vmatprep.subr.bf16.mxu0 0
    %75 = vmatpush1.bf16.msra.mxu0 %v61
    %76 = vmatprep.subr.bf16.mxu0 0
    %77 = vmatpush1.bf16.msra.mxu0 %v62
    %78 = vmatprep.subr.bf16.mxu0 0
    %79 = vmatpush1.bf16.msra.mxu0 0
    %80 = vmatprep.subr.bf16.mxu0 0
    %81 = vmatpush1.bf16.msra.mxu0 0
    %82 = vmatprep.subr.bf16.mxu0 0
    %83 = vmatpush1.bf16.msra.mxu0 0
    %84 = vmatprep.subr.bf16.mxu0 0
    %85 = vmatpush1.bf16.msra.mxu0 0
    %86 = vmatprep.subr.bf16.mxu0 0
    %87 = vmatpush1.bf16.msra.mxu0 0
    %88 = vmatprep.subr.bf16.mxu0 0
    %89 = vmatpush1.bf16.msra.mxu0 0
    %90 = vmatprep.subr.bf16.mxu0 0
    %91 = vmatpush1.bf16.msra.mxu0 0
    %92 = vmatprep.subr.bf16.mxu0 0
    %93 = vmatpush1.bf16.msra.mxu0 0
    %94 = vmatprep.subr.bf16.mxu0 0
    %95 = vmatpush1.bf16.msra.mxu0 0
    %96 = vmatprep.subr.bf16.mxu0 0
    %97 = vmatpush1.bf16.msra.mxu0 0
    %98 = vmatprep.subr.bf16.mxu0 0
    %99 = vmatpush1.bf16.msra.mxu0 0
    %100 = vmatprep.subr.bf16.mxu0 0
    %101 = vmatpush1.bf16.msra.mxu0 0
    %102 = vmatprep.mubr.bf16.mxu0 0
    %103 = vmatmul.mubr.bf16.gmra.mrb[0].mxu0 %v65
    %v104 = vpop.f32.mrb[0].mxu0
    %v105 = vadd.f32 0.0, %v104
    %v106 = vpop.f32.mrb[0].mxu0
    %v107 = vpop.f32.mrb[0].mxu0
    %v108 = vadd.f32 0.0, %v107
    %v109 = vpop.f32.mrb[0].mxu0
    %110 = vmatprep.mubr.bf16.mxu0 0
    %111 = vmatmul.mubr.bf16.gmra.mrb[0].mxu0 %v68
    %v112 = vpop.f32.mrb[0].mxu0
    %v113 = vadd.f32 0.0, %v112
    %v114 = vpop.f32.mrb[0].mxu0
    %v115 = vpop.f32.mrb[0].mxu0
    %v116 = vadd.f32 0.0, %v115
    %v117 = vpop.f32.mrb[0].mxu0
    %118 = vdwg.mxu0
    %v119 = vpack.c.bf16 %v108, %v105
    %v120 = vpack.c.bf16 %v116, %v113
    %v123 = vunpack.c.l.b16 %v119
    %v124 = vunpack.c.h.b16 %v119
    %v125 = vunpack.c.l.b16 %v120
    %v126 = vunpack.c.h.b16 %v120
    %v127 = vpack.c.b16 %v123, %v123
    %v128 = vpack.c.b16 %v124, %v124
    %v129 = vpack.c.b16 %v125, %v125
    %v130 = vpack.c.b16 %v126, %v126
    %vm135 = vcmask 519168
    %136 = vst.msk [vmem:[#allocation7] sm:$0xf] %vm135, %v127
    %137 = vst.msk [vmem:[#allocation7 + $0x4] sm:$0xf] %vm135, %v128
    %138 = vst.msk [vmem:[#allocation7 + $0x8] sm:$0xf] %vm135, %v129
    %139 = vst.msk [vmem:[#allocation7 + $0xc] sm:$0xf] %vm135, %v130
    %144 = vrot.lane.b32.xlu0 %v105, 64
    %v145 = vpop.permute.xlu0 %144
    %146 = vrot.lane.b32.xlu0 %v108, 64
    %v147 = vpop.permute.xlu0 %146
    %148 = vrot.lane.b32.xlu0 %v113, 64
    %v149 = vpop.permute.xlu0 %148
    %150 = vrot.lane.b32.xlu0 %v116, 64
    %v151 = vpop.permute.xlu0 %150
    %vm156 = vcmask 7168
    %157 = vst.msk [vmem:[%s3] sm:$0xff] %vm156, %v145
    %158 = vst.msk [vmem:[%s3 + $0x8] sm:$0xff] %vm156, %v147
    %159 = vst.msk [vmem:[%s3 + $0x10] sm:$0xff] %vm156, %v149
    %160 = vst.msk [vmem:[%s3 + $0x18] sm:$0xff] %vm156, %v151
    %161 = vrot.lane.b32.xlu0 %v105, 63
    %v162 = vpop.permute.xlu0 %161
    %163 = vrot.lane.b32.xlu0 %v108, 63
    %v164 = vpop.permute.xlu0 %163
    %165 = vrot.lane.b32.xlu0 %v113, 63
    %v166 = vpop.permute.xlu0 %165
    %167 = vrot.lane.b32.xlu0 %v116, 63
    %v168 = vpop.permute.xlu0 %167
    %173 = vxpose.xlu0.b32.start [1/16] %v162, 128
    %174 = vxpose.xlu0.b32.cont [2/16] %v164, 128
    %175 = vxpose.xlu0.b32.cont [3/16] %v166, 128
    %176 = vxpose.xlu0.b32.cont [4/16] %v168, 128
    %177 = vxpose.xlu0.b32.cont [5/16] 0.0, 128
    %178 = vxpose.xlu0.b32.cont [6/16] 0.0, 128
    %179 = vxpose.xlu0.b32.cont [7/16] 0.0, 128
    %180 = vxpose.xlu0.b32.cont [8/16] 0.0, 128
    %181 = vxpose.xlu0.b32.cont [9/16] 0.0, 128
    %182 = vxpose.xlu0.b32.cont [10/16] 0.0, 128
    %183 = vxpose.xlu0.b32.cont [11/16] 0.0, 128
    %184 = vxpose.xlu0.b32.cont [12/16] 0.0, 128
    %185 = vxpose.xlu0.b32.cont [13/16] 0.0, 128
    %186 = vxpose.xlu0.b32.cont [14/16] 0.0, 128
    %187 = vxpose.xlu0.b32.cont [15/16] 0.0, 128
    %188 = vxpose.xlu0.b32.end [16/16] 0.0, 128
    %v189 = vpop.trf.xlu0
    %v190 = vpop.trf.xlu0
    %v191 = vpop.trf.xlu0
    %v192 = vpop.trf.xlu0
    %v193 = vpop.trf.xlu0
    %v194 = vpop.trf.xlu0
    %v195 = vpop.trf.xlu0
    %v196 = vpop.trf.xlu0
    %v197 = vpop.trf.xlu0
    %v198 = vpop.trf.xlu0
    %v199 = vpop.trf.xlu0
    %v200 = vpop.trf.xlu0
    %v201 = vpop.trf.xlu0
    %v202 = vpop.trf.xlu0
    %v203 = vpop.trf.xlu0
    %v204 = vpop.trf.xlu0
    %vm205 = vcmask 253952
    %206 = vst.msk [vmem:[#allocation8] sm:$0x1] %vm205, %v189
    // Predicated region
    $region18: #{tpu_custom_call.1} parent=1 // pred_check
      _
    $region19: #{tpu_custom_call.1} parent=1 // pred_check_branch
      %208 = sbr.rel (0) target = $region21
    $region20: #{tpu_custom_call.1} parent=1 // pred_region
      %s210 = ssub.s32 256, 256
      %211 = vsyncadd [#allocation4], %s210
      %s212 = sshll.u32 [#allocation7], 4
      %s213 = int_to_ptr.vmem [resolvable:$true] %s212
      %218 = dma.vmem_to_hbm [thread:$0]  %s213, 256, %s2, [#allocation4], 64, 64, 4
    $region21: #{tpu_custom_call.1} parent=1 // pred_fallthru
      _
    // Predicated region
    $region22: #{tpu_custom_call.1} parent=1 // pred_check
      _
    $region23: #{tpu_custom_call.1} parent=1 // pred_check_branch
      %220 = sbr.rel (0) target = $region25
    $region24: #{tpu_custom_call.1} parent=1 // pred_region
      _
    $region25: #{tpu_custom_call.1} parent=1 // pred_fallthru
      _
    // Predicated region
    $region26: #{tpu_custom_call.1} parent=1 // pred_check
      _
    $region27: #{tpu_custom_call.1} parent=1 // pred_check_branch
      %222 = sbr.rel (0) target = $region29
    $region28: #{tpu_custom_call.1} parent=1 // pred_region
      %s224 = ssub.s32 16, 16
      %225 = vsyncadd [#allocation9], %s224
      %s227 = sshll.u32 [#allocation8], 4
      %s228 = int_to_ptr.vmem [resolvable:$true] %s227
      %230 = dma.vmem_to_hbm [thread:$0]  %s228, 16, %s4, [#allocation9]
    $region29: #{tpu_custom_call.1} parent=1 // pred_fallthru
      _
    // Predicated region
    $region30: #{tpu_custom_call.1} parent=1 // pred_check
      _
    $region31: #{tpu_custom_call.1} parent=1 // pred_check_branch
      %232 = sbr.rel (0) target = $region33
    $region32: #{tpu_custom_call.1} parent=1 // pred_region
      %233 = dma.done [#allocation4], 256
    $region33: #{tpu_custom_call.1} parent=1 // pred_fallthru
      _
    // Predicated region
    $region34: #{tpu_custom_call.1} parent=1 // pred_check
      _
    $region35: #{tpu_custom_call.1} parent=1 // pred_check_branch
      %235 = sbr.rel (0) target = $region37
    $region36: #{tpu_custom_call.1} parent=1 // pred_region
      _
    $region37: #{tpu_custom_call.1} parent=1 // pred_fallthru
      _
    // Predicated region
    $region38: #{tpu_custom_call.1} parent=1 // pred_check
      _
    $region39: #{tpu_custom_call.1} parent=1 // pred_check_branch
      %237 = sbr.rel (0) target = $region41
    $region40: #{tpu_custom_call.1} parent=1 // pred_region
      %238 = dma.done [#allocation9], 16
    $region41: #{tpu_custom_call.1} parent=1 // pred_fallthru
      _
    %239 = vsyncpa [#allocation3], 1
    %240 = vsyncpa [#allocation6], 1
    %241 = vsyncpa [#allocation4], 1
    %242 = vsyncpa [#allocation9], 1

</llo_original>
